<compile_context>
chip_gen: v7x
topology: tpu7x:2x2x1
jax: 0.10.0
libtpu: 0.0.40
codegen_flags: <defaults>
</compile_context>

<pallas_src>
import jax
import jax.numpy as jnp
from jax.experimental import pallas as pl
from jax.experimental.pallas import tpu as pltpu


def gcn_kernel(a_ref, xrow_ref, w1_ref, b1_ref, w2_ref, b2_ref, out_ref):
    a = a_ref[...]                                               # (N, N) f32 normalized adjacency

    # ----- Layer 1: GraphConv + ReLU -----
    # Aggregate A_hat @ x (in_feats == 1): VPU broadcast multiply with the
    # lane-dense (1, N) feature row + XLU reduce over lanes.  No MXU matvec.
    agg = jnp.sum(a * xrow_ref[...], axis=-1, keepdims=True)     # (N, 1) f32
    # Linear with in_feats == 1: broadcast outer product on the VPU.
    h = jnp.maximum(agg * w1_ref[...] + b1_ref[...], 0.0)        # (N, H) f32, bias + ReLU

    # ----- Layer 2: GraphConv + ReLU -----
    # Reassociate: A_hat @ (H @ W2) so the (N,N) aggregation only has
    # num_classes output columns.  w2 arrives pre-cast to bf16; only the
    # data-dependent activation cast happens in-kernel.
    hw2 = jnp.dot(h.astype(jnp.bfloat16), w2_ref[...],
                  preferred_element_type=jnp.float32)            # (N, C) f32
    h2 = jnp.dot(a, hw2, preferred_element_type=jnp.float32)     # (N, C) f32
    h2 = jnp.maximum(h2 + b2_ref[...], 0.0)                      # bias + ReLU (f32 epilogue)

    # ----- dgl.mean_nodes(g, 'h'): mean over nodes of the (single) graph -----
    # C=8 output occupies 8/128 lanes (masked store) — negligible at this size;
    # batch graphs along the lane axis if this ever matters.
    out_ref[...] = jnp.mean(h2, axis=0, keepdims=True)           # (1, C) f32


def gcn_forward(a_hat, x, w1, b1, w2, b2):
    n, in_f = x.shape
    assert in_f == 1, "reference script uses in_feats = 1"
    num_classes = w2.shape[1]

    # Hoisted, loop-invariant prep (stays outside the kernel):
    x_row = x.reshape(1, n).astype(jnp.float32)   # lane-dense feature row for the VPU matvec
    w2_bf = w2.astype(jnp.bfloat16)               # MXU operand fed pre-cast
    a_f32 = a_hat.astype(jnp.float32)             # keep f32 at toy N for tight accuracy
                                                  # (down-cast to bf16 only in the tiled large-N path)

    vmem = pl.BlockSpec(memory_space=pltpu.MemorySpace.VMEM)

    # No grid: single invocation, whole (tiny) operands resident in VMEM,
    # no pipeline bookkeeping, no double-buffering.
    return pl.pallas_call(
        gcn_kernel,
        out_shape=jax.ShapeDtypeStruct((1, num_classes), jnp.float32),
        in_specs=[vmem, vmem, vmem, vmem, vmem, vmem],
        out_specs=vmem,
    )(a_f32, x_row, w1, b1, w2_bf, b2)


def build_normalized_adjacency(num_nodes):
    """Dense symmetric ring graph; every node has degree 2 (no zero in-degree),
    normalized as D^-1/2 A D^-1/2 exactly like DGL GraphConv with norm='both'."""
    idx = jnp.arange(num_nodes)
    nxt = (idx + 1) % num_nodes
    a = jnp.zeros((num_nodes, num_nodes), jnp.float32)
    a = a.at[idx, nxt].set(1.0)
    a = a.at[nxt, idx].set(1.0)
    deg = jnp.sum(a, axis=1)
    d_inv_sqrt = 1.0 / jnp.sqrt(deg)
    return a * d_inv_sqrt[:, None] * d_inv_sqrt[None, :]


if __name__ == "__main__":
    # Small, module-consistent shapes.
    num_nodes = 16
    in_feats = 1          # matches `in_feats = 1` in the reference script
    h_feats = 32
    num_classes = 8

    key = jax.random.PRNGKey(0)
    k_x, k_w1, k_b1, k_w2, k_b2 = jax.random.split(key, 5)

    # Node features (N, in_feats)
    x = jax.random.normal(k_x, (num_nodes, in_feats), dtype=jnp.float32)

    # Deterministic parameter init (glorot-ish scale), shapes per GraphConv.
    w1 = jax.random.normal(k_w1, (in_feats, h_feats), dtype=jnp.float32) * 0.5
    b1 = jax.random.normal(k_b1, (1, h_feats), dtype=jnp.float32) * 0.1
    w2 = jax.random.normal(k_w2, (h_feats, num_classes), dtype=jnp.float32) * 0.2
    b2 = jax.random.normal(k_b2, (1, num_classes), dtype=jnp.float32) * 0.1

    a_hat = build_normalized_adjacency(num_nodes)

    out = gcn_forward(a_hat, x, w1, b1, w2, b2)
    out = jax.block_until_ready(out)

    # Plain-JAX f32 reference of the same math (conv1 -> ReLU -> conv2 -> ReLU -> mean).
    # Only w2 / the layer-2 activation ride the MXU in bf16, so the tolerance is modest.
    ref = jnp.maximum(a_hat @ x @ w1 + b1, 0.0)
    ref = jnp.maximum(a_hat @ ref @ w2 + b2, 0.0)
    ref = jnp.mean(ref, axis=0, keepdims=True)
    assert out.shape == (1, num_classes)
    assert jnp.allclose(out, ref, atol=1e-2, rtol=1e-2), (out, ref)

    print("KERNEL_OK")
</pallas_src>

<mosaic_0001>
module attributes {stable_mosaic.version = 11 : i64} {
  func.func @gcn_kernel(%arg0: memref<16x16xf32, #tpu.memory_space<vmem>>, %arg1: memref<1x16xf32, #tpu.memory_space<vmem>>, %arg2: memref<1x32xf32, #tpu.memory_space<vmem>>, %arg3: memref<1x32xf32, #tpu.memory_space<vmem>>, %arg4: memref<32x8xbf16, #tpu.memory_space<vmem>>, %arg5: memref<1x8xf32, #tpu.memory_space<vmem>>, %arg6: memref<1x8xf32, #tpu.memory_space<vmem>>) attributes {dimension_semantics = [], scalar_prefetch = 0 : i64, scratch_operands = 0 : i64, tpu.core_type = #tpu.core_type<tc>} {
    %c0 = arith.constant 0 : index
    %c0_0 = arith.constant 0 : index
    %0 = vector.load %arg0[%c0, %c0_0] : memref<16x16xf32, #tpu.memory_space<vmem>>, vector<16x16xf32>
    %c0_1 = arith.constant 0 : index
    %c0_2 = arith.constant 0 : index
    %1 = vector.load %arg1[%c0_1, %c0_2] : memref<1x16xf32, #tpu.memory_space<vmem>>, vector<1x16xf32>
    %2 = vector.broadcast %1 : vector<1x16xf32> to vector<16x16xf32>
    %3 = arith.mulf %0, %2 : vector<16x16xf32>
    %cst = arith.constant dense<0.000000e+00> : vector<16xf32>
    %4 = vector.multi_reduction <add>, %3, %cst [1] : vector<16x16xf32> to vector<16xf32>
    %5 = vector.shape_cast %4 : vector<16xf32> to vector<16x1xf32>
    %c0_3 = arith.constant 0 : index
    %c0_4 = arith.constant 0 : index
    %6 = vector.load %arg2[%c0_3, %c0_4] : memref<1x32xf32, #tpu.memory_space<vmem>>, vector<1x32xf32>
    %7 = vector.broadcast %5 : vector<16x1xf32> to vector<16x32xf32>
    %8 = vector.broadcast %6 : vector<1x32xf32> to vector<16x32xf32>
    %9 = arith.mulf %7, %8 : vector<16x32xf32>
    %c0_5 = arith.constant 0 : index
    %c0_6 = arith.constant 0 : index
    %10 = vector.load %arg3[%c0_5, %c0_6] : memref<1x32xf32, #tpu.memory_space<vmem>>, vector<1x32xf32>
    %11 = vector.broadcast %10 : vector<1x32xf32> to vector<16x32xf32>
    %12 = arith.addf %9, %11 : vector<16x32xf32>
    %cst_7 = arith.constant 0.000000e+00 : f32
    %13 = vector.broadcast %cst_7 : f32 to vector<16x32xf32>
    %14 = arith.maximumf %12, %13 : vector<16x32xf32>
    %15 = arith.truncf %14 : vector<16x32xf32> to vector<16x32xbf16>
    %c0_8 = arith.constant 0 : index
    %c0_9 = arith.constant 0 : index
    %16 = vector.load %arg4[%c0_8, %c0_9] : memref<32x8xbf16, #tpu.memory_space<vmem>>, vector<32x8xbf16>
    %cst_10 = arith.constant dense<0.000000e+00> : vector<16x8xf32>
    %17 = tpu.matmul %15, %16, %cst_10 {dimension_numbers = #tpu.dot_dimension_numbers<[1], [0], [0], [1], [0, 0, 1, 1], [], []>} : vector<16x32xbf16>, vector<32x8xbf16>, vector<16x8xf32> -> vector<16x8xf32>
    %cst_11 = arith.constant dense<0.000000e+00> : vector<16x8xf32>
    %18 = tpu.matmul %0, %17, %cst_11 {dimension_numbers = #tpu.dot_dimension_numbers<[1], [0], [0], [1], [0, 0, 1, 1], [], []>} : vector<16x16xf32>, vector<16x8xf32>, vector<16x8xf32> -> vector<16x8xf32>
    %c0_12 = arith.constant 0 : index
    %c0_13 = arith.constant 0 : index
    %19 = vector.load %arg5[%c0_12, %c0_13] : memref<1x8xf32, #tpu.memory_space<vmem>>, vector<1x8xf32>
    %20 = vector.broadcast %19 : vector<1x8xf32> to vector<16x8xf32>
    %21 = arith.addf %18, %20 : vector<16x8xf32>
    %cst_14 = arith.constant 0.000000e+00 : f32
    %22 = vector.broadcast %cst_14 : f32 to vector<16x8xf32>
    %23 = arith.maximumf %21, %22 : vector<16x8xf32>
    %cst_15 = arith.constant dense<0.000000e+00> : vector<8xf32>
    %24 = vector.multi_reduction <add>, %23, %cst_15 [0] : vector<16x8xf32> to vector<8xf32>
    %25 = vector.shape_cast %24 : vector<8xf32> to vector<1x8xf32>
    %cst_16 = arith.constant 1.600000e+01 : f32
    %26 = vector.broadcast %cst_16 : f32 to vector<1x8xf32>
    %27 = arith.divf %25, %26 : vector<1x8xf32>
    %c0_17 = arith.constant 0 : index
    %c0_18 = arith.constant 0 : index
    %28 = vector.load %arg6[%c0_17, %c0_18] : memref<1x8xf32, #tpu.memory_space<vmem>>, vector<1x8xf32>
    tpu.vector_store %arg6[%c0_17, %c0_18], %27 {strides = array<i32>} : memref<1x8xf32, #tpu.memory_space<vmem>>, vector<1x8xf32>,
    return
  }
}

</mosaic_0001>

<llo_original>
// kernel: tpu_custom_call.1
$region0: #{tpu_custom_call.1}
  #allocation0 [shape = 'u32[]', space=smem, size = 0x4, offset = 0x4, fixed_abs, tag = 'smem constant byte address 0x4 - core index']
  #allocation1 [shape = 'u32[144,128]{1,0:T(1,128)}', space=vmem, size = 0x12000, scoped, tag = 'internal scratch']
  %s0 = inlined_call_operand.vmem [shape: f32[16,16], index: 0, kind: input, shape index: {}]
  %s1 = inlined_call_operand.vmem [shape: f32[1,16], index: 1, kind: input, shape index: {}]
  %s2 = inlined_call_operand.vmem [shape: f32[1,32], index: 2, kind: input, shape index: {}]
  %s3 = inlined_call_operand.vmem [shape: f32[1,32], index: 3, kind: input, shape index: {}]
  %s4 = inlined_call_operand.vmem [shape: bf16[32,8], index: 4, kind: input, shape index: {}]
  %s5 = inlined_call_operand.vmem [shape: f32[1,8], index: 5, kind: input, shape index: {}]
  %s6 = inlined_call_operand.hbm [shape: f32[1,8], index: 6, kind: output, shape index: {}]
  %s7 = sld [smem:[#allocation0]]
  $region34: #{tpu_custom_call.1} parent=0
    _
  %s9 = ssub.s32 1, %s7
  %s10 = scalar_select 0, %s9, %s7
  $region1: #{tpu_custom_call.1} parent=0
    #allocation2 [shape = 'u8[512]{0}', space=vmem, size = 0x400, scoped, tag = 'output window, operand 0, single buffered']
    #allocation3 [shape = 's32[1]{0}', space=sflag, size = 0x4, scoped, tag = 'scoped memory for tpu_custom_call.1']
    %11 = vsyncpa [#allocation3], 0
    // Predicated region
    $region2: #{tpu_custom_call.1} parent=1 // pred_check
      _
    $region3: #{tpu_custom_call.1} parent=1 // pred_check_branch
      %13 = sbr.rel (0) target = $region5
    $region4: #{tpu_custom_call.1} parent=1 // pred_region
      _
    $region5: #{tpu_custom_call.1} parent=1 // pred_fallthru
      _
    // Predicated region
    $region6: #{tpu_custom_call.1} parent=1 // pred_check
      _
    $region7: #{tpu_custom_call.1} parent=1 // pred_check_branch
      %15 = sbr.rel (0) target = $region9
    $region8: #{tpu_custom_call.1} parent=1 // pred_region
      _
    $region9: #{tpu_custom_call.1} parent=1 // pred_fallthru
      _
    // Predicated region
    $region10: #{tpu_custom_call.1} parent=1 // pred_check
      _
    $region11: #{tpu_custom_call.1} parent=1 // pred_check_branch
      %17 = sbr.rel (0) target = $region13
    $region12: #{tpu_custom_call.1} parent=1 // pred_region
      _
    $region13: #{tpu_custom_call.1} parent=1 // pred_fallthru
      _
    // Predicated region
    $region14: #{tpu_custom_call.1} parent=1 // pred_check
      _
    $region15: #{tpu_custom_call.1} parent=1 // pred_check_branch
      %19 = sbr.rel (0) target = $region17
    $region16: #{tpu_custom_call.1} parent=1 // pred_region
      _
    $region17: #{tpu_custom_call.1} parent=1 // pred_fallthru
      _
    // Predicated region
    $region18: #{tpu_custom_call.1} parent=1 // pred_check
      _
    $region19: #{tpu_custom_call.1} parent=1 // pred_check_branch
      %21 = sbr.rel (0) target = $region21
    $region20: #{tpu_custom_call.1} parent=1 // pred_region
      _
    $region21: #{tpu_custom_call.1} parent=1 // pred_fallthru
      _
    // Predicated region
    $region22: #{tpu_custom_call.1} parent=1 // pred_check
      _
    $region23: #{tpu_custom_call.1} parent=1 // pred_check_branch
      %23 = sbr.rel (0) target = $region25
    $region24: #{tpu_custom_call.1} parent=1 // pred_region
      _
    $region25: #{tpu_custom_call.1} parent=1 // pred_fallthru
      _
    %v25 = vld [vmem:[%s0] sm:$0xff]
    %v26 = vld [vmem:[%s0 + $0x8] sm:$0xff]
    %v27 = vld [vmem:[%s1] sm:$0x1]
    %v29 = vlaneseq
    %v30 = vshrl.u32 %v29, 7
    %v31 = vsub.s32 0, %v30
    %v32 = vrot.slane %v27, %v31
    %v34 = vmul.f32 %v25, %v32
    %v35 = vmul.f32 %v26, %v32
    %vm36 = vcmask 130048
    %v37 = vsel %vm36, %v34, 0.0
    %38 = vadd.xlane.f32.xlu0 %v37
    %v39 = vpop.xlane.xlu0 %38
    %v40 = vsel %vm36, %v35, 0.0
    %41 = vadd.xlane.f32.xlu0 %v40
    %v42 = vpop.xlane.xlu0 %41
    %v43 = vld [vmem:[%s2] sm:$0x1]
    %v45 = vlaneseq
    %v46 = vshrl.u32 %v45, 7
    %v47 = vsub.s32 0, %v46
    %v48 = vrot.slane %v43, %v47
    %v50 = vmul.f32 %v39, %v48
    %v51 = vmul.f32 %v42, %v48
    %v52 = vld [vmem:[%s3] sm:$0x1]
    %v54 = vlaneseq
    %v55 = vshrl.u32 %v54, 7
    %v56 = vsub.s32 0, %v55
    %v57 = vrot.slane %v52, %v56
    %v59 = vadd.f32 %v50, %v57
    %v60 = vadd.f32 %v51, %v57
    %v61 = vmax.f32 %v59, 0.0
    %v62 = vmax.f32 %v60, 0.0
    %v63 = vpack.c.bf16 %v62, %v61
    %v64 = vld [vmem:[%s4] sm:$0xf]
    %v65 = vld [vmem:[%s4 + $0x4] sm:$0xf]
    %v66 = vld [vmem:[%s4 + $0x8] sm:$0xf]
    %v67 = vld [vmem:[%s4 + $0xc] sm:$0xf]
    %v72 = vunpack.c.l.b16 %v64
    %v73 = vunpack.c.l.b16 %v65
    %v74 = vunpack.c.l.b16 %v66
    %v75 = vunpack.c.l.b16 %v67
    %v76 = vpack.c.b16 %v73, %v72
    %v77 = vpack.c.b16 %v75, %v74
    %vm80 = vcmask 261120
    %v82 = vsel %vm80, %v63, 0
    %84 = vmatprep.subr.bf16.mxu0 0
    %85 = vmatpush1.bf16.msra.mxu0 %v76
    %86 = vmatprep.subr.bf16.mxu0 0
    %87 = vmatpush1.bf16.msra.mxu0 %v77
    %88 = vmatprep.subr.bf16.mxu0 0
    %89 = vmatpush1.bf16.msra.mxu0 0
    %90 = vmatprep.subr.bf16.mxu0 0
    %91 = vmatpush1.bf16.msra.mxu0 0
    %92 = vmatprep.subr.bf16.mxu0 0
    %93 = vmatpush1.bf16.msra.mxu0 0
    %94 = vmatprep.subr.bf16.mxu0 0
    %95 = vmatpush1.bf16.msra.mxu0 0
    %96 = vmatprep.subr.bf16.mxu0 0
    %97 = vmatpush1.bf16.msra.mxu0 0
    %98 = vmatprep.subr.bf16.mxu0 0
    %99 = vmatpush1.bf16.msra.mxu0 0
    %100 = vmatprep.subr.bf16.mxu0 0
    %101 = vmatpush1.bf16.msra.mxu0 0
    %102 = vmatprep.subr.bf16.mxu0 0
    %103 = vmatpush1.bf16.msra.mxu0 0
    %104 = vmatprep.subr.bf16.mxu0 0
    %105 = vmatpush1.bf16.msra.mxu0 0
    %106 = vmatprep.subr.bf16.mxu0 0
    %107 = vmatpush1.bf16.msra.mxu0 0
    %108 = vmatprep.subr.bf16.mxu0 0
    %109 = vmatpush1.bf16.msra.mxu0 0
    %110 = vmatprep.subr.bf16.mxu0 0
    %111 = vmatpush1.bf16.msra.mxu0 0
    %112 = vmatprep.subr.bf16.mxu0 0
    %113 = vmatpush1.bf16.msra.mxu0 0
    %114 = vmatprep.subr.bf16.mxu0 0
    %115 = vmatpush1.bf16.msra.mxu0 0
    %116 = vmatprep.mubr.bf16.mxu0 0
    %117 = vmatmul.mubr.bf16.gmra.mrb[0].mxu0 %v82
    %v118 = vpop.f32.mrb[0].mxu0
    %v119 = vadd.f32 0.0, %v118
    %v120 = vpop.f32.mrb[0].mxu0
    %v121 = vpop.f32.mrb[0].mxu0
    %v122 = vadd.f32 0.0, %v121
    %v123 = vpop.f32.mrb[0].mxu0
    %124 = vdwg.mxu0
    %v125 = vld [vmem:[%s5] sm:$0x1]
    %v127 = vlaneseq
    %v128 = vshrl.u32 %v127, 7
    %v129 = vsub.s32 0, %v128
    %v130 = vrot.slane %v125, %v129
    %v133 = vsel %vm36, %v25, 0
    %v136 = vsel %vm36, %v26, 0
    %138 = vmatprep.subr.mxu0 0.0
    %139 = vmatpush1.msra.mxu0 %v119
    %140 = vmatprep.subr.mxu0 0.0
    %141 = vmatpush1.msra.mxu0 %v122
    %142 = vmatprep.subr.mxu0 0.0
    %143 = vmatpush1.msra.mxu0 0.0
    %144 = vmatprep.subr.mxu0 0.0
    %145 = vmatpush1.msra.mxu0 0.0
    %146 = vmatprep.subr.mxu0 0.0
    %147 = vmatpush1.msra.mxu0 0.0
    %148 = vmatprep.subr.mxu0 0.0
    %149 = vmatpush1.msra.mxu0 0.0
    %150 = vmatprep.subr.mxu0 0.0
    %151 = vmatpush1.msra.mxu0 0.0
    %152 = vmatprep.subr.mxu0 0.0
    %153 = vmatpush1.msra.mxu0 0.0
    %154 = vmatprep.subr.mxu0 0.0
    %155 = vmatpush1.msra.mxu0 0.0
    %156 = vmatprep.subr.mxu0 0.0
    %157 = vmatpush1.msra.mxu0 0.0
    %158 = vmatprep.subr.mxu0 0.0
    %159 = vmatpush1.msra.mxu0 0.0
    %160 = vmatprep.subr.mxu0 0.0
    %161 = vmatpush1.msra.mxu0 0.0
    %162 = vmatprep.subr.mxu0 0.0
    %163 = vmatpush1.msra.mxu0 0.0
    %164 = vmatprep.subr.mxu0 0.0
    %165 = vmatpush1.msra.mxu0 0.0
    %166 = vmatprep.subr.mxu0 0.0
    %167 = vmatpush1.msra.mxu0 0.0
    %168 = vmatprep.subr.mxu0 0.0
    %169 = vmatpush1.msra.mxu0 0.0
    %170 = vmatprep.subr.mxu0 0.0
    %171 = vmatpush1.msra.mxu0 0.0
    %172 = vmatprep.subr.mxu0 0.0
    %173 = vmatpush1.msra.mxu0 0.0
    %174 = vmatprep.subr.mxu0 0.0
    %175 = vmatpush1.msra.mxu0 0.0
    %176 = vmatprep.subr.mxu0 0.0
    %177 = vmatpush1.msra.mxu0 0.0
    %178 = vmatprep.subr.mxu0 0.0
    %179 = vmatpush1.msra.mxu0 0.0
    %180 = vmatprep.subr.mxu0 0.0
    %181 = vmatpush1.msra.mxu0 0.0
    %182 = vmatprep.subr.mxu0 0.0
    %183 = vmatpush1.msra.mxu0 0.0
    %184 = vmatprep.subr.mxu0 0.0
    %185 = vmatpush1.msra.mxu0 0.0
    %186 = vmatprep.subr.mxu0 0.0
    %187 = vmatpush1.msra.mxu0 0.0
    %188 = vmatprep.subr.mxu0 0.0
    %189 = vmatpush1.msra.mxu0 0.0
    %190 = vmatprep.subr.mxu0 0.0
    %191 = vmatpush1.msra.mxu0 0.0
    %192 = vmatprep.subr.mxu0 0.0
    %193 = vmatpush1.msra.mxu0 0.0
    %194 = vmatprep.subr.mxu0 0.0
    %195 = vmatpush1.msra.mxu0 0.0
    %196 = vmatprep.subr.mxu0 0.0
    %197 = vmatpush1.msra.mxu0 0.0
    %198 = vmatprep.subr.mxu0 0.0
    %199 = vmatpush1.msra.mxu0 0.0
    %200 = vmatprep.subr.mxu0 0.0
    %201 = vmatpush1.msra.mxu0 0.0
    %202 = vmatprep.mubr.f32.mxu0 0.0
    %203 = vmatmul.mubr.f32.gmra.mrb[0].mxu0 %v133
    %v204 = vpop.f32.mrb[0].mxu0
    %v205 = vadd.f32 %v130, %v204
    %v206 = vpop.f32.mrb[0].mxu0
    %207 = vmatprep.mubr.f32.mxu0 0.0
    %208 = vmatmul.mubr.f32.gmra.mrb[0].mxu0 %v136
    %v209 = vpop.f32.mrb[0].mxu0
    %v210 = vadd.f32 %v130, %v209
    %v211 = vpop.f32.mrb[0].mxu0
    %212 = vdwg.mxu0
    %v213 = vmax.f32 %v205, 0.0
    %v214 = vmax.f32 %v210, 0.0
    %vm215 = vcmask 64512
    %v216 = vsel %vm215, %v213, 0.0
    %v217 = vsel %vm215, %v214, 0.0
    %v218 = vadd.f32 %v216, %v217
    %v219 = vrot.slane %v218, 4
    %v220 = vadd.f32 %v218, %v219
    %v221 = vrot.slane %v220, 2
    %v222 = vadd.f32 %v220, %v221
    %v223 = vrot.slane %v222, 1
    %v224 = vadd.f32 %v222, %v223
    %v225 = vrcp.pop 16.0
    %v226 = vmul.f32 %v224, %v225
    %vm227 = vcmask 57344
    %228 = vst.msk [vmem:[#allocation2] sm:$0x1] %vm227, %v226
    // Predicated region
    $region26: #{tpu_custom_call.1} parent=1 // pred_check
      _
    $region27: #{tpu_custom_call.1} parent=1 // pred_check_branch
      %230 = sbr.rel (0) target = $region29
    $region28: #{tpu_custom_call.1} parent=1 // pred_region
      %s232 = ssub.s32 16, 16
      %233 = vsyncadd [#allocation3], %s232
      %s235 = sshll.u32 [#allocation2], 4
      %s236 = int_to_ptr.vmem [resolvable:$true] %s235
      %238 = dma.vmem_to_hbm [thread:$0]  %s236, 16, %s6, [#allocation3]
    $region29: #{tpu_custom_call.1} parent=1 // pred_fallthru
      _
    // Predicated region
    $region30: #{tpu_custom_call.1} parent=1 // pred_check
      _
    $region31: #{tpu_custom_call.1} parent=1 // pred_check_branch
      %240 = sbr.rel (0) target = $region33
    $region32: #{tpu_custom_call.1} parent=1 // pred_region
      %241 = dma.done [#allocation3], 16
    $region33: #{tpu_custom_call.1} parent=1 // pred_fallthru
      _
    %242 = vsyncpa [#allocation3], 1

</llo_original>
